<compile_context>
chip_gen: v7x
topology: tpu7x:2x2x1
jax: 0.10.0
libtpu: 0.0.40
codegen_flags: <defaults>
</compile_context>

<pallas_src>
import jax
import jax.numpy as jnp
from jax.experimental import pallas as pl
from jax.experimental.pallas import tpu as pltpu

NUM_SESSION_FEATURES = 52
NUM_HIDDEN_FEATURES = 104
HID_PAD = 128                       # hidden dim padded to one full lane group

_COMPUTE_DTYPE = jnp.bfloat16       # matmul inputs
_ACC_DTYPE = jnp.float32            # accumulation / biases / output


def _round_up(x, m):
    return ((x + m - 1) // m) * m


def _linreg_kernel(x_ref, wA_ref, b1_ref, w2h_ref, b2_ref, o_ref):
    # x_ref: (TB, input_size) f32 batch tile; weights/biases are VMEM-resident.
    # In-kernel cast to bf16 (kernel is DMA-bound; this is free VPU work and
    # avoids a separate HBM cast pass in the wrapper).
    x = x_ref[...].astype(_COMPUTE_DTYPE)

    # Single fused MXU push: y = x @ [w1_pad(128 cols) | w2_remaining_pad].
    # Zero-padded rows/cols contribute exactly zero, so the decomposition is
    # mathematically identical to slicing x into session/remaining parts.
    y = jnp.dot(x, wA_ref[...], preferred_element_type=_ACC_DTYPE)

    # Session branch: first 128 lanes -> bias + ReLU (padded lanes stay 0).
    h = jnp.maximum(y[:, :HID_PAD] + b1_ref[...], 0.0)        # f32 (TB, 128)

    # Final layer: remaining-feature partial result (lanes >= 128) plus the
    # hidden-feature contribution (K padded to 128 with zero rows in w2h).
    out = (y[:, HID_PAD:]
           + jnp.dot(h.astype(_COMPUTE_DTYPE), w2h_ref[...],
                     preferred_element_type=_ACC_DTYPE)
           + b2_ref[...])
    o_ref[...] = out.astype(o_ref.dtype)                       # (TB, output_size)


def _pick_batch_tile(batch, block_batch):
    # Multiple of 16 rows (bf16 sublane packing) and, when possible, at least
    # two grid steps so the "parallel" axis can use both v7x TensorCores.
    half = _round_up(max(1, (batch + 1) // 2), 16)
    tb = min(block_batch, half)
    tb = max(16, (tb // 16) * 16)
    return tb


def linear_regression_forward(x, w1, b1, w2, b2, *, input_size, output_size,
                              block_batch=4096):
    """Forward pass of LinearRegressionModel.

    x : (B, input_size) float array
    w1: (52, 104)   session weight, stored (in, out)
    b1: (104,)      session bias
    w2: (input_size - 52 + 104, output_size) final weight, stored (in, out)
    b2: (output_size,) final bias
    """
    batch = x.shape[0]
    num_remaining = input_size - NUM_SESSION_FEATURES

    # ---- one-time wrapper-side weight prep (outside the grid loop) ----
    # w1 zero-padded over the full feature axis and to 128 output columns.
    w1_pad = jnp.zeros((input_size, HID_PAD), _COMPUTE_DTYPE)
    w1_pad = w1_pad.at[num_remaining:, :NUM_HIDDEN_FEATURES].set(
        w1.astype(_COMPUTE_DTYPE))
    # Final-layer rows for the remaining features, zero-padded over the full
    # feature axis (session-feature rows are zero).
    w2x_pad = jnp.zeros((input_size, output_size), _COMPUTE_DTYPE)
    w2x_pad = w2x_pad.at[:num_remaining, :].set(
        w2[:num_remaining, :].astype(_COMPUTE_DTYPE))
    # Fused RHS for the single x-matmul: (input_size, 128 + output_size).
    wA = jnp.concatenate([w1_pad, w2x_pad], axis=1)
    # Final-layer rows for the hidden features, K padded to 128 with zeros.
    w2h_pad = jnp.zeros((HID_PAD, output_size), _COMPUTE_DTYPE)
    w2h_pad = w2h_pad.at[:NUM_HIDDEN_FEATURES, :].set(
        w2[num_remaining:, :].astype(_COMPUTE_DTYPE))
    # Biases as 2D f32 rows.
    b1_pad = jnp.zeros((1, HID_PAD), _ACC_DTYPE)
    b1_pad = b1_pad.at[0, :NUM_HIDDEN_FEATURES].set(b1.astype(_ACC_DTYPE))
    b2_2d = b2.astype(_ACC_DTYPE).reshape(1, output_size)

    # ---- batch tiling (no wrapper-side pad/cast of x) ----
    tb = _pick_batch_tile(batch, block_batch)
    grid = ((batch + tb - 1) // tb,)

    resident = lambda i: (0, 0)                      # weights/biases stay put
    out = pl.pallas_call(
        _linreg_kernel,
        out_shape=jax.ShapeDtypeStruct((batch, output_size), _ACC_DTYPE),
        grid=grid,
        in_specs=[
            pl.BlockSpec((tb, input_size), lambda i: (i, 0)),          # x tile
            pl.BlockSpec((input_size, HID_PAD + output_size), resident),  # wA
            pl.BlockSpec((1, HID_PAD), resident),                      # b1
            pl.BlockSpec((HID_PAD, output_size), resident),            # w2h
            pl.BlockSpec((1, output_size), resident),                  # b2
        ],
        out_specs=pl.BlockSpec((tb, output_size), lambda i: (i, 0)),
        compiler_params=pltpu.CompilerParams(
            dimension_semantics=("parallel",),   # shard batch across TCs (v7x)
            vmem_limit_bytes=32 * 1024 * 1024,   # explicit for v5e / v7x
        ),
    )(x, wA, b1_pad, w2h_pad, b2_2d)

    return out


def _xavier_uniform(key, fan_in, fan_out, dtype=jnp.float32):
    # Matches nn.init.xavier_uniform_ bounds; stored (in, out) so x @ W works.
    limit = (6.0 / (fan_in + fan_out)) ** 0.5
    return jax.random.uniform(key, (fan_in, fan_out), dtype,
                              minval=-limit, maxval=limit)


def _linear_bias(key, fan_in, size, dtype=jnp.float32):
    # PyTorch nn.Linear default bias init: U(-1/sqrt(fan_in), 1/sqrt(fan_in)).
    bound = 1.0 / (fan_in ** 0.5)
    return jax.random.uniform(key, (size,), dtype, minval=-bound, maxval=bound)


if __name__ == "__main__":
    input_size = 116          # remaining = 64, final layer input = 64 + 104 = 168
    output_size = 8
    batch = 64
    num_remaining = input_size - NUM_SESSION_FEATURES
    final_in = num_remaining + NUM_HIDDEN_FEATURES

    key = jax.random.PRNGKey(0)
    kx, kw1, kb1, kw2, kb2 = jax.random.split(key, 5)

    x = jax.random.normal(kx, (batch, input_size), jnp.float32)
    w1 = _xavier_uniform(kw1, NUM_SESSION_FEATURES, NUM_HIDDEN_FEATURES)
    b1 = _linear_bias(kb1, NUM_SESSION_FEATURES, NUM_HIDDEN_FEATURES)
    w2 = _xavier_uniform(kw2, final_in, output_size)
    b2 = _linear_bias(kb2, final_in, output_size)

    out = linear_regression_forward(
        x, w1, b1, w2, b2, input_size=input_size, output_size=output_size)
    out = jax.block_until_ready(out)

    # Pure-JAX reference with the same bf16-in / f32-accumulate arithmetic.
    # TODO(synk): if exact f32 parity with PyTorch is required, keep x/weights
    # in f32 inside the kernel (still mem-bound, ~2x input read cost).
    x_bf = x.astype(_COMPUTE_DTYPE)
    w1_bf = w1.astype(_COMPUTE_DTYPE)
    w2_bf = w2.astype(_COMPUTE_DTYPE)
    h = jnp.maximum(
        jnp.dot(x_bf[:, num_remaining:], w1_bf,
                preferred_element_type=jnp.float32) + b1, 0.0)
    ref = (jnp.dot(x_bf[:, :num_remaining], w2_bf[:num_remaining, :],
                   preferred_element_type=jnp.float32)
           + jnp.dot(h.astype(_COMPUTE_DTYPE), w2_bf[num_remaining:, :],
                     preferred_element_type=jnp.float32)
           + b2)

    assert out.shape == (batch, output_size)
    assert jnp.allclose(out, ref, atol=2e-2, rtol=2e-2), (
        float(jnp.max(jnp.abs(out - ref))))

    print("KERNEL_OK")
</pallas_src>

<mosaic_0001>
module attributes {stable_mosaic.version = 11 : i64} {
  func.func @_linreg_kernel(%arg0: i32, %arg1: memref<32x116xf32, #tpu.memory_space<vmem>>, %arg2: memref<116x136xbf16, #tpu.memory_space<vmem>>, %arg3: memref<1x128xf32, #tpu.memory_space<vmem>>, %arg4: memref<128x8xbf16, #tpu.memory_space<vmem>>, %arg5: memref<1x8xf32, #tpu.memory_space<vmem>>, %arg6: memref<32x8xf32, #tpu.memory_space<vmem>>) attributes {dimension_semantics = [#tpu.dimension_semantics<parallel>], iteration_bounds = array<i64: 2>, scalar_prefetch = 0 : i64, scratch_operands = 0 : i64, tpu.core_type = #tpu.core_type<tc>, window_params = [{transform_indices = @transform_0, window_bounds = array<i64: 32, 116>}, {pipeline_mode = #tpu.pipeline_mode<synchronous>, transform_indices = @transform_1, window_bounds = array<i64: 116, 136>}, {pipeline_mode = #tpu.pipeline_mode<synchronous>, transform_indices = @transform_2, window_bounds = array<i64: 1, 128>}, {pipeline_mode = #tpu.pipeline_mode<synchronous>, transform_indices = @transform_3, window_bounds = array<i64: 128, 8>}, {pipeline_mode = #tpu.pipeline_mode<synchronous>, transform_indices = @transform_4, window_bounds = array<i64: 1, 8>}, {transform_indices = @transform_5, window_bounds = array<i64: 32, 8>}]} {
    %c0 = arith.constant 0 : index
    %c0_0 = arith.constant 0 : index
    %0 = vector.load %arg1[%c0, %c0_0] : memref<32x116xf32, #tpu.memory_space<vmem>>, vector<32x116xf32>
    %1 = arith.truncf %0 : vector<32x116xf32> to vector<32x116xbf16>
    %c0_1 = arith.constant 0 : index
    %c0_2 = arith.constant 0 : index
    %2 = vector.load %arg2[%c0_1, %c0_2] : memref<116x136xbf16, #tpu.memory_space<vmem>>, vector<116x136xbf16>
    %cst = arith.constant dense<0.000000e+00> : vector<32x136xf32>
    %3 = tpu.matmul %1, %2, %cst {dimension_numbers = #tpu.dot_dimension_numbers<[1], [0], [0], [1], [0, 0, 1, 1], [], []>} : vector<32x116xbf16>, vector<116x136xbf16>, vector<32x136xf32> -> vector<32x136xf32>
    %4 = vector.extract_strided_slice %3 {offsets = [0, 0], sizes = [32, 128], strides = [1, 1]} : vector<32x136xf32> to vector<32x128xf32>
    %c0_3 = arith.constant 0 : index
    %c0_4 = arith.constant 0 : index
    %5 = vector.load %arg3[%c0_3, %c0_4] : memref<1x128xf32, #tpu.memory_space<vmem>>, vector<1x128xf32>
    %6 = vector.broadcast %5 : vector<1x128xf32> to vector<32x128xf32>
    %7 = arith.addf %4, %6 : vector<32x128xf32>
    %cst_5 = arith.constant 0.000000e+00 : f32
    %8 = vector.broadcast %cst_5 : f32 to vector<32x128xf32>
    %9 = arith.maximumf %7, %8 : vector<32x128xf32>
    %10 = vector.extract_strided_slice %3 {offsets = [0, 128], sizes = [32, 8], strides = [1, 1]} : vector<32x136xf32> to vector<32x8xf32>
    %11 = arith.truncf %9 : vector<32x128xf32> to vector<32x128xbf16>
    %c0_6 = arith.constant 0 : index
    %c0_7 = arith.constant 0 : index
    %12 = vector.load %arg4[%c0_6, %c0_7] : memref<128x8xbf16, #tpu.memory_space<vmem>>, vector<128x8xbf16>
    %cst_8 = arith.constant dense<0.000000e+00> : vector<32x8xf32>
    %13 = tpu.matmul %11, %12, %cst_8 {dimension_numbers = #tpu.dot_dimension_numbers<[1], [0], [0], [1], [0, 0, 1, 1], [], []>} : vector<32x128xbf16>, vector<128x8xbf16>, vector<32x8xf32> -> vector<32x8xf32>
    %14 = arith.addf %10, %13 : vector<32x8xf32>
    %c0_9 = arith.constant 0 : index
    %c0_10 = arith.constant 0 : index
    %15 = vector.load %arg5[%c0_9, %c0_10] : memref<1x8xf32, #tpu.memory_space<vmem>>, vector<1x8xf32>
    %16 = vector.broadcast %15 : vector<1x8xf32> to vector<32x8xf32>
    %17 = arith.addf %14, %16 : vector<32x8xf32>
    %c0_11 = arith.constant 0 : index
    %c0_12 = arith.constant 0 : index
    %18 = vector.load %arg6[%c0_11, %c0_12] : memref<32x8xf32, #tpu.memory_space<vmem>>, vector<32x8xf32>
    tpu.vector_store %arg6[%c0_11, %c0_12], %17 {strides = array<i32>} : memref<32x8xf32, #tpu.memory_space<vmem>>, vector<32x8xf32>,
    return
  }
  func.func @transform_0(%arg0: i32) -> (i32, i32) {
    %c0_i32 = arith.constant 0 : i32
    %c0_i32_0 = arith.constant 0 : i32
    return %arg0, %c0_i32 : i32, i32
  }
  func.func @transform_1(%arg0: i32) -> (i32, i32) {
    %c0_i32 = arith.constant 0 : i32
    %c0_i32_0 = arith.constant 0 : i32
    %c0_i32_1 = arith.constant 0 : i32
    return %c0_i32, %c0_i32_0 : i32, i32
  }
  func.func @transform_2(%arg0: i32) -> (i32, i32) {
    %c0_i32 = arith.constant 0 : i32
    %c0_i32_0 = arith.constant 0 : i32
    %c0_i32_1 = arith.constant 0 : i32
    return %c0_i32, %c0_i32_0 : i32, i32
  }
  func.func @transform_3(%arg0: i32) -> (i32, i32) {
    %c0_i32 = arith.constant 0 : i32
    %c0_i32_0 = arith.constant 0 : i32
    %c0_i32_1 = arith.constant 0 : i32
    return %c0_i32, %c0_i32_0 : i32, i32
  }
  func.func @transform_4(%arg0: i32) -> (i32, i32) {
    %c0_i32 = arith.constant 0 : i32
    %c0_i32_0 = arith.constant 0 : i32
    %c0_i32_1 = arith.constant 0 : i32
    return %c0_i32, %c0_i32_0 : i32, i32
  }
  func.func @transform_5(%arg0: i32) -> (i32, i32) {
    %c0_i32 = arith.constant 0 : i32
    %c0_i32_0 = arith.constant 0 : i32
    return %arg0, %c0_i32 : i32, i32
  }
}

</mosaic_0001>

<llo_original>
// kernel: tpu_custom_call.1
$region0: #{tpu_custom_call.1}
  #allocation0 [shape = 'u32[]', space=smem, size = 0x4, offset = 0x4, fixed_abs, tag = 'smem constant byte address 0x4 - core index']
  #allocation1 [shape = 'u32[144,128]{1,0:T(1,128)}', space=vmem, size = 0x12000, scoped, tag = 'internal scratch']
  %s0 = inlined_call_operand.vmem [shape: f32[64,116], index: 0, kind: input, shape index: {}]
  %s1 = inlined_call_operand.vmem [shape: bf16[116,136], index: 1, kind: input, shape index: {}]
  %s2 = inlined_call_operand.vmem [shape: f32[1,128], index: 2, kind: input, shape index: {}]
  %s3 = inlined_call_operand.vmem [shape: bf16[128,8], index: 3, kind: input, shape index: {}]
  %s4 = inlined_call_operand.vmem [shape: f32[1,8], index: 4, kind: input, shape index: {}]
  %s5 = inlined_call_operand.vmem [shape: f32[64,8], index: 5, kind: output, shape index: {}]
  %s6 = sld [smem:[#allocation0]]
  $region53: #{tpu_custom_call.1} parent=0
    _
  %s8 = ssub.s32 1, %s6
  %s9 = scalar_select 0, %s8, %s6
  loop: start=0, step=1, limit=4
  $region2: #{tpu_custom_call.1} parent=0 // loop_pre_header
    _
  $region3: #{tpu_custom_call.1} parent=0 // loop_header
    %s11 = sphi 0, %s15
    %p12 = scmp.ge.s32.totalorder %s11, 4
    %s21 = sphi 0, %s23
    %s24 = sphi 0, %s21
    %s25 = sphi 0, %s24
    %s41 = sphi 0, %s25
    %s45 = sphi 0, %s45
    %s47 = sphi 0, %s45
    %s48 = sphi 0, %s47
    %s62 = sphi 0, %s48
    %s66 = sphi 0, %s66
    %s68 = sphi 0, %s66
    %s69 = sphi 0, %s68
    %s83 = sphi 0, %s69
    %s87 = sphi 0, %s87
    %s89 = sphi 0, %s87
    %s90 = sphi 0, %s89
    %s104 = sphi 0, %s90
    %s108 = sphi 0, %s108
    %s110 = sphi 0, %s108
    %s111 = sphi 0, %s110
    %s125 = sphi 0, %s111
    %s131 = sphi 0, %s133
    %s134 = sphi 0, %s131
    %s135 = sphi 0, %s134
    %s151 = sphi 0, %s135
  $region4: #{tpu_custom_call.1} parent=0 // loop_header_branch
    %14 = sbr.rel (%p12) target = $region8
  $region5: #{tpu_custom_call.1} parent=0 // loop_body
    %s16 = ssub.s32 %s11, 1
    %s17 = ssub.s32 %s11, 2
    %s18 = sadd.s32 %s11, 1
    %s19 = ssub.s32 %s11, %s18
    %p20 = scmp.eq.s32.totalorder %s19, 0
    %s22 = sadd.s32 %s21, 1
    %s23 = scalar_select %p20, %s21, %s22
    %p26 = pneg %p20
    %p27 = scmp.eq.s32.totalorder %s11, 1
    %p28 = por %p26, %p27
    %p29 = scmp.ne.s32.totalorder %s21, %s24
    %p30 = scmp.eq.s32.totalorder %s11, 0
    %p31 = por %p29, %p30
    %p32 = scmp.ne.s32.totalorder %s21, %s24
    %p33 = scmp.eq.s32.totalorder %s16, 1
    %p34 = por %p32, %p33
    %p35 = scmp.ne.s32.totalorder %s24, %s25
    %p36 = scmp.eq.s32.totalorder %s16, 0
    %p37 = por %p35, %p36
    %p38 = scmp.ne.s32.totalorder %s24, %s25
    %p39 = scmp.eq.s32.totalorder %s17, 1
    %p40 = por %p38, %p39
    %p42 = scmp.ne.s32.totalorder %s25, %s41
    %p43 = scmp.eq.s32.totalorder %s17, 0
    %p44 = por %p42, %p43
    %s46 = sadd.s32 %s45, 1
    %p49 = scmp.eq.s32.totalorder %s11, 1
    %p50 = scmp.ne.s32.totalorder %s45, %s47
    %p51 = scmp.eq.s32.totalorder %s11, 0
    %p52 = por %p50, %p51
    %p53 = scmp.ne.s32.totalorder %s45, %s47
    %p54 = scmp.eq.s32.totalorder %s16, 1
    %p55 = por %p53, %p54
    %p56 = scmp.ne.s32.totalorder %s47, %s48
    %p57 = scmp.eq.s32.totalorder %s16, 0
    %p58 = por %p56, %p57
    %p59 = scmp.ne.s32.totalorder %s47, %s48
    %p60 = scmp.eq.s32.totalorder %s17, 1
    %p61 = por %p59, %p60
    %p63 = scmp.ne.s32.totalorder %s48, %s62
    %p64 = scmp.eq.s32.totalorder %s17, 0
    %p65 = por %p63, %p64
    %s67 = sadd.s32 %s66, 1
    %p70 = scmp.eq.s32.totalorder %s11, 1
    %p71 = scmp.ne.s32.totalorder %s66, %s68
    %p72 = scmp.eq.s32.totalorder %s11, 0
    %p73 = por %p71, %p72
    %p74 = scmp.ne.s32.totalorder %s66, %s68
    %p75 = scmp.eq.s32.totalorder %s16, 1
    %p76 = por %p74, %p75
    %p77 = scmp.ne.s32.totalorder %s68, %s69
    %p78 = scmp.eq.s32.totalorder %s16, 0
    %p79 = por %p77, %p78
    %p80 = scmp.ne.s32.totalorder %s68, %s69
    %p81 = scmp.eq.s32.totalorder %s17, 1
    %p82 = por %p80, %p81
    %p84 = scmp.ne.s32.totalorder %s69, %s83
    %p85 = scmp.eq.s32.totalorder %s17, 0
    %p86 = por %p84, %p85
    %s88 = sadd.s32 %s87, 1
    %p91 = scmp.eq.s32.totalorder %s11, 1
    %p92 = scmp.ne.s32.totalorder %s87, %s89
    %p93 = scmp.eq.s32.totalorder %s11, 0
    %p94 = por %p92, %p93
    %p95 = scmp.ne.s32.totalorder %s87, %s89
    %p96 = scmp.eq.s32.totalorder %s16, 1
    %p97 = por %p95, %p96
    %p98 = scmp.ne.s32.totalorder %s89, %s90
    %p99 = scmp.eq.s32.totalorder %s16, 0
    %p100 = por %p98, %p99
    %p101 = scmp.ne.s32.totalorder %s89, %s90
    %p102 = scmp.eq.s32.totalorder %s17, 1
    %p103 = por %p101, %p102
    %p105 = scmp.ne.s32.totalorder %s90, %s104
    %p106 = scmp.eq.s32.totalorder %s17, 0
    %p107 = por %p105, %p106
    %s109 = sadd.s32 %s108, 1
    %p112 = scmp.eq.s32.totalorder %s11, 1
    %p113 = scmp.ne.s32.totalorder %s108, %s110
    %p114 = scmp.eq.s32.totalorder %s11, 0
    %p115 = por %p113, %p114
    %p116 = scmp.ne.s32.totalorder %s108, %s110
    %p117 = scmp.eq.s32.totalorder %s16, 1
    %p118 = por %p116, %p117
    %p119 = scmp.ne.s32.totalorder %s110, %s111
    %p120 = scmp.eq.s32.totalorder %s16, 0
    %p121 = por %p119, %p120
    %p122 = scmp.ne.s32.totalorder %s110, %s111
    %p123 = scmp.eq.s32.totalorder %s17, 1
    %p124 = por %p122, %p123
    %p126 = scmp.ne.s32.totalorder %s111, %s125
    %p127 = scmp.eq.s32.totalorder %s17, 0
    %p128 = por %p126, %p127
    %s129 = ssub.s32 %s11, %s18
    %p130 = scmp.eq.s32.totalorder %s129, 0
    %s132 = sadd.s32 %s131, 1
    %s133 = scalar_select %p130, %s131, %s132
    %p136 = pneg %p130
    %p137 = scmp.eq.s32.totalorder %s11, 1
    %p138 = por %p136, %p137
    %p139 = scmp.ne.s32.totalorder %s131, %s134
    %p140 = scmp.eq.s32.totalorder %s11, 0
    %p141 = por %p139, %p140
    %p142 = scmp.ne.s32.totalorder %s131, %s134
    %p143 = scmp.eq.s32.totalorder %s16, 1
    %p144 = por %p142, %p143
    %p145 = scmp.ne.s32.totalorder %s134, %s135
    %p146 = scmp.eq.s32.totalorder %s16, 0
    %p147 = por %p145, %p146
    %p148 = scmp.ne.s32.totalorder %s134, %s135
    %p149 = scmp.eq.s32.totalorder %s17, 1
    %p150 = por %p148, %p149
    %p152 = scmp.ne.s32.totalorder %s135, %s151
    %p153 = scmp.eq.s32.totalorder %s17, 0
    %p154 = por %p152, %p153
    %p155 = scmp.le.s32.totalorder 1, %s11
    %p156 = scmp.lt.s32.totalorder %s11, 3
    %p157 = pnand %p155, %p156
    %p158 = pneg %p157
    // Predicated region
    $region9: #{tpu_custom_call.1} parent=5 // pred_check
      _
    $region10: #{tpu_custom_call.1} parent=5 // pred_check_branch
      %160 = sbr.rel (%p157) target = $region12
    $region11: #{tpu_custom_call.1} parent=5 // pred_region
      %s161 = ssub.s32 %s11, 1
      // Predicated region
      $region13: #{tpu_custom_call.1} parent=11 // pred_check
        %p162 = pneg %p58
      $region14: #{tpu_custom_call.1} parent=11 // pred_check_branch
        %164 = sbr.rel (%p162) target = $region16
      $region15: #{tpu_custom_call.1} parent=11 // pred_region
        _
      $region16: #{tpu_custom_call.1} parent=11 // pred_fallthru
        _
      // Predicated region
      $region17: #{tpu_custom_call.1} parent=11 // pred_check
        %p165 = pneg %p79
      $region18: #{tpu_custom_call.1} parent=11 // pred_check_branch
        %167 = sbr.rel (%p165) target = $region20
      $region19: #{tpu_custom_call.1} parent=11 // pred_region
        _
      $region20: #{tpu_custom_call.1} parent=11 // pred_fallthru
        _
      // Predicated region
      $region21: #{tpu_custom_call.1} parent=11 // pred_check
        %p168 = pneg %p100
      $region22: #{tpu_custom_call.1} parent=11 // pred_check_branch
        %170 = sbr.rel (%p168) target = $region24
      $region23: #{tpu_custom_call.1} parent=11 // pred_region
        _
      $region24: #{tpu_custom_call.1} parent=11 // pred_fallthru
        _
      // Predicated region
      $region25: #{tpu_custom_call.1} parent=11 // pred_check
        %p171 = pneg %p121
      $region26: #{tpu_custom_call.1} parent=11 // pred_check_branch
        %173 = sbr.rel (%p171) target = $region28
      $region27: #{tpu_custom_call.1} parent=11 // pred_region
        _
      $region28: #{tpu_custom_call.1} parent=11 // pred_fallthru
        _
    $region12: #{tpu_custom_call.1} parent=5 // pred_fallthru
      _
    %p174 = scmp.lt.s32.totalorder %s11, 2
    // Predicated region
    $region29: #{tpu_custom_call.1} parent=5 // pred_check
      %p175 = pneg %p174
    $region30: #{tpu_custom_call.1} parent=5 // pred_check_branch
      %177 = sbr.rel (%p175) target = $region32
    $region31: #{tpu_custom_call.1} parent=5 // pred_region
      // Predicated region
      $region33: #{tpu_custom_call.1} parent=31 // pred_check
        %p178 = pneg %p31
      $region34: #{tpu_custom_call.1} parent=31 // pred_check_branch
        %180 = sbr.rel (%p178) target = $region36
      $region35: #{tpu_custom_call.1} parent=31 // pred_region
        %s181 = smul.u32 4, %s11
        %p182 = scmp.lt.s32.totalorder %s181, 7
        %s183 = scalar_select %p182, %s181, 7
        %s184 = smul.addr %s183, 8
        %s185 = scalar_lea.vmem %s0, %s184
        %s186 = smul.u32 4, %s11
      $region36: #{tpu_custom_call.1} parent=31 // pred_fallthru
        _
    $region32: #{tpu_custom_call.1} parent=5 // pred_fallthru
      _
    %p187 = scmp.le.s32.totalorder 1, %s11
    %p188 = scmp.lt.s32.totalorder %s11, 3
    %p189 = pnand %p187, %p188
    %p190 = pneg %p189
    // Predicated region
    $region37: #{tpu_custom_call.1} parent=5 // pred_check
      _
    $region38: #{tpu_custom_call.1} parent=5 // pred_check_branch
      %192 = sbr.rel (%p189) target = $region40
    $region39: #{tpu_custom_call.1} parent=5 // pred_region
      %s193 = ssub.s32 %s11, 1
      %s194 = smul.u32 4, %s16
      %p195 = scmp.lt.s32.totalorder %s194, 7
      %s196 = scalar_select %p195, %s194, 7
      %s197 = smul.addr %s196, 8
      %s198 = scalar_lea.vmem %s0, %s197
      %p199 = pneg %p37
      %p200 = pneg %p34
      %p201 = pneg %p58
      %p202 = pneg %p55
      %p203 = pneg %p79
      %p204 = pneg %p76
      %p205 = pneg %p100
      %p206 = pneg %p97
      %p207 = pneg %p121
      %p208 = pneg %p118
      %p209 = pneg %p147
      %p210 = pneg %p144
      %s211 = smul.u32 4, %s16
      %p212 = scmp.lt.s32.totalorder %s211, 7
      %s213 = scalar_select %p212, %s211, 7
      %s214 = smul.addr %s213, 8
      %s215 = scalar_lea.vmem %s5, %s214
      %s216 = smul.u32 4, %s16
      %p217 = scmp.lt.s32.totalorder %s216, 7
      %s218 = scalar_select %p217, %s216, 7
      %s219 = smul.addr %s218, 8
      %s220 = scalar_lea.vmem %s0, %s219
      %s221 = smul.u32 4, %s16
      %s222 = smul.u32 4, %s16
      %p223 = scmp.lt.s32.totalorder %s222, 7
      %s224 = scalar_select %p223, %s222, 7
      %s225 = smul.addr %s224, 8
      %s226 = scalar_lea.vmem %s5, %s225
      %s227 = smul.u32 4, %s16
      %v229 = vld [vmem:[%s220] sm:$0xff]
      %v230 = vld [vmem:[%s220 + $0x8] sm:$0xff]
      %v231 = vld [vmem:[%s220 + $0x10] sm:$0xff]
      %v232 = vld [vmem:[%s220 + $0x18] sm:$0xff]
      %v233 = vpack.c.bf16 %v230, %v229
      %v234 = vpack.c.bf16 %v232, %v231
      %v235 = vld [vmem:[%s1] sm:$0xff]
      %v236 = vld [vmem:[%s1 + $0x8] sm:$0xff]
      %v237 = vld [vmem:[%s1 + $0x10] sm:$0xff]
      %v238 = vld [vmem:[%s1 + $0x18] sm:$0xff]
      %v239 = vld [vmem:[%s1 + $0x20] sm:$0xff]
      %v240 = vld [vmem:[%s1 + $0x28] sm:$0xff]
      %v241 = vld [vmem:[%s1 + $0x30] sm:$0xff]
      %v242 = vld [vmem:[%s1 + $0x38] sm:$0xff]
      %v243 = vld [vmem:[%s1 + $0x40] sm:$0xff]
      %v244 = vld [vmem:[%s1 + $0x48] sm:$0xff]
      %v245 = vld [vmem:[%s1 + $0x50] sm:$0xff]
      %v246 = vld [vmem:[%s1 + $0x58] sm:$0xff]
      %v247 = vld [vmem:[%s1 + $0x60] sm:$0xff]
      %v248 = vld [vmem:[%s1 + $0x68] sm:$0xff]
      %v249 = vld [vmem:[%s1 + $0x70] sm:$0x33]
      %v265 = vunpack.c.l.b16 %v235
      %v266 = vunpack.c.h.b16 %v235
      %v267 = vunpack.c.l.b16 %v236
      %v268 = vunpack.c.h.b16 %v236
      %v269 = vunpack.c.l.b16 %v237
      %v270 = vunpack.c.h.b16 %v237
      %v271 = vunpack.c.l.b16 %v238
      %v272 = vunpack.c.h.b16 %v238
      %v273 = vunpack.c.l.b16 %v239
      %v274 = vunpack.c.h.b16 %v239
      %v275 = vunpack.c.l.b16 %v240
      %v276 = vunpack.c.h.b16 %v240
      %v277 = vunpack.c.l.b16 %v241
      %v278 = vunpack.c.h.b16 %v241
      %v279 = vunpack.c.l.b16 %v242
      %v280 = vunpack.c.h.b16 %v242
      %v281 = vunpack.c.l.b16 %v243
      %v282 = vunpack.c.h.b16 %v243
      %v283 = vunpack.c.l.b16 %v244
      %v284 = vunpack.c.h.b16 %v244
      %v285 = vunpack.c.l.b16 %v245
      %v286 = vunpack.c.h.b16 %v245
      %v287 = vunpack.c.l.b16 %v246
      %v288 = vunpack.c.h.b16 %v246
      %v289 = vunpack.c.l.b16 %v247
      %v290 = vunpack.c.h.b16 %v247
      %v291 = vunpack.c.l.b16 %v248
      %v292 = vunpack.c.h.b16 %v248
      %v293 = vunpack.c.l.b16 %v249
      %v294 = vunpack.c.h.b16 %v249
      %v295 = vpack.c.b16 %v267, %v265
      %v296 = vpack.c.b16 %v268, %v266
      %v297 = vpack.c.b16 %v271, %v269
      %v298 = vpack.c.b16 %v272, %v270
      %v299 = vpack.c.b16 %v275, %v273
      %v300 = vpack.c.b16 %v276, %v274
      %v301 = vpack.c.b16 %v279, %v277
      %v302 = vpack.c.b16 %v280, %v278
      %v303 = vpack.c.b16 %v283, %v281
      %v304 = vpack.c.b16 %v284, %v282
      %v305 = vpack.c.b16 %v287, %v285
      %v306 = vpack.c.b16 %v288, %v286
      %v307 = vpack.c.b16 %v291, %v289
      %v308 = vpack.c.b16 %v292, %v290
      %v309 = vpack.c.b16 %v293, %v293
      %v310 = vpack.c.b16 %v294, %v294
      %vm325 = vcmask 949248
      %v327 = vsel %vm325, %v233, 0
      %v330 = vsel %vm325, %v234, 0
      %vm332 = vcmask 1041408
      %v334 = vsel %vm332, %v309, 0
      %v337 = vsel %vm332, %v310, 0
      %339 = vmatprep.subr.bf16.mxu0 %v296
      %340 = vmatpush1.bf16.msra.mxu0 %v295
      %341 = vmatprep.subr.bf16.mxu0 %v298
      %342 = vmatpush1.bf16.msra.mxu0 %v297
      %343 = vmatprep.subr.bf16.mxu0 %v300
      %344 = vmatpush1.bf16.msra.mxu0 %v299
      %345 = vmatprep.subr.bf16.mxu0 %v302
      %346 = vmatpush1.bf16.msra.mxu0 %v301
      %347 = vmatprep.subr.bf16.mxu0 %v304
      %348 = vmatpush1.bf16.msra.mxu0 %v303
      %349 = vmatprep.subr.bf16.mxu0 %v306
      %350 = vmatpush1.bf16.msra.mxu0 %v305
      %351 = vmatprep.subr.bf16.mxu0 %v308
      %352 = vmatpush1.bf16.msra.mxu0 %v307
      %353 = vmatprep.subr.bf16.mxu0 %v337
      %354 = vmatpush1.bf16.msra.mxu0 %v334
      %355 = vmatprep.subr.bf16.mxu0 0
      %356 = vmatpush1.bf16.msra.mxu0 0
      %357 = vmatprep.subr.bf16.mxu0 0
      %358 = vmatpush1.bf16.msra.mxu0 0
      %359 = vmatprep.subr.bf16.mxu0 0
      %360 = vmatpush1.bf16.msra.mxu0 0
      %361 = vmatprep.subr.bf16.mxu0 0
      %362 = vmatpush1.bf16.msra.mxu0 0
      %363 = vmatprep.subr.bf16.mxu0 0
      %364 = vmatpush1.bf16.msra.mxu0 0
      %365 = vmatprep.subr.bf16.mxu0 0
      %366 = vmatpush1.bf16.msra.mxu0 0
      %367 = vmatprep.subr.bf16.mxu0 0
      %368 = vmatpush1.bf16.msra.mxu0 0
      %369 = vmatprep.subr.bf16.mxu0 0
      %370 = vmatpush1.bf16.msra.mxu0 0
      %371 = vmatprep.mubr.bf16.mxu0 0
      %372 = vmatmul.mubr.bf16.gmra.mrb[0].mxu0 %v327
      %v373 = vpop.f32.mrb[0].mxu0
      %v374 = vadd.f32 0.0, %v373
      %v375 = vpop.f32.mrb[0].mxu0
      %v376 = vadd.f32 0.0, %v375
      %v377 = vpop.f32.mrb[0].mxu0
      %v378 = vadd.f32 0.0, %v377
      %v379 = vpop.f32.mrb[0].mxu0
      %v380 = vadd.f32 0.0, %v379
      %381 = vmatprep.mubr.bf16.mxu0 0
      %382 = vmatmul.mubr.bf16.gmra.mrb[0].mxu0 %v330
      %v383 = vpop.f32.mrb[0].mxu0
      %v384 = vadd.f32 0.0, %v383
      %v385 = vpop.f32.mrb[0].mxu0
      %v386 = vadd.f32 0.0, %v385
      %v387 = vpop.f32.mrb[0].mxu0
      %v388 = vadd.f32 0.0, %v387
      %v389 = vpop.f32.mrb[0].mxu0
      %v390 = vadd.f32 0.0, %v389
      %391 = vdwg.mxu0
      %v392 = vld [vmem:[%s2] sm:$0x1]
      %v394 = vlaneseq
      %v395 = vshrl.u32 %v394, 7
      %v396 = vsub.s32 0, %v395
      %v397 = vrot.slane %v392, %v396
      %v399 = vadd.f32 %v374, %v397
      %v400 = vadd.f32 %v378, %v397
      %v401 = vadd.f32 %v384, %v397
      %v402 = vadd.f32 %v388, %v397
      %v403 = vmax.f32 %v399, 0.0
      %v404 = vmax.f32 %v400, 0.0
      %v405 = vmax.f32 %v401, 0.0
      %v406 = vmax.f32 %v402, 0.0
      %v407 = vpack.c.bf16 %v404, %v403
      %v408 = vpack.c.bf16 %v406, %v405
      %v409 = vld [vmem:[%s3] sm:$0xf]
      %v410 = vld [vmem:[%s3 + $0x4] sm:$0xf]
      %v411 = vld [vmem:[%s3 + $0x8] sm:$0xf]
      %v412 = vld [vmem:[%s3 + $0xc] sm:$0xf]
      %v413 = vld [vmem:[%s3 + $0x10] sm:$0xf]
      %v414 = vld [vmem:[%s3 + $0x14] sm:$0xf]
      %v415 = vld [vmem:[%s3 + $0x18] sm:$0xf]
      %v416 = vld [vmem:[%s3 + $0x1c] sm:$0xf]
      %v417 = vld [vmem:[%s3 + $0x20] sm:$0xf]
      %v418 = vld [vmem:[%s3 + $0x24] sm:$0xf]
      %v419 = vld [vmem:[%s3 + $0x28] sm:$0xf]
      %v420 = vld [vmem:[%s3 + $0x2c] sm:$0xf]
      %v421 = vld [vmem:[%s3 + $0x30] sm:$0xf]
      %v422 = vld [vmem:[%s3 + $0x34] sm:$0xf]
      %v423 = vld [vmem:[%s3 + $0x38] sm:$0xf]
      %v424 = vld [vmem:[%s3 + $0x3c] sm:$0xf]
      %v441 = vunpack.c.l.b16 %v409
      %v442 = vunpack.c.l.b16 %v410
      %v443 = vunpack.c.l.b16 %v411
      %v444 = vunpack.c.l.b16 %v412
      %v445 = vunpack.c.l.b16 %v413
      %v446 = vunpack.c.l.b16 %v414
      %v447 = vunpack.c.l.b16 %v415
      %v448 = vunpack.c.l.b16 %v416
      %v449 = vunpack.c.l.b16 %v417
      %v450 = vunpack.c.l.b16 %v418
      %v451 = vunpack.c.l.b16 %v419
      %v452 = vunpack.c.l.b16 %v420
      %v453 = vunpack.c.l.b16 %v421
      %v454 = vunpack.c.l.b16 %v422
      %v455 = vunpack.c.l.b16 %v423
      %v456 = vunpack.c.l.b16 %v424
      %v457 = vpack.c.b16 %v442, %v441
      %v458 = vpack.c.b16 %v444, %v443
      %v459 = vpack.c.b16 %v446, %v445
      %v460 = vpack.c.b16 %v448, %v447
      %v461 = vpack.c.b16 %v450, %v449
      %v462 = vpack.c.b16 %v452, %v451
      %v463 = vpack.c.b16 %v454, %v453
      %v464 = vpack.c.b16 %v456, %v455
      %473 = vmatprep.subr.bf16.mxu0 0
      %474 = vmatpush1.bf16.msra.mxu0 %v457
      %475 = vmatprep.subr.bf16.mxu0 0
      %476 = vmatpush1.bf16.msra.mxu0 %v458
      %477 = vmatprep.subr.bf16.mxu0 0
      %478 = vmatpush1.bf16.msra.mxu0 %v459
      %479 = vmatprep.subr.bf16.mxu0 0
      %480 = vmatpush1.bf16.msra.mxu0 %v460
      %481 = vmatprep.subr.bf16.mxu0 0
      %482 = vmatpush1.bf16.msra.mxu0 %v461
      %483 = vmatprep.subr.bf16.mxu0 0
      %484 = vmatpush1.bf16.msra.mxu0 %v462
      %485 = vmatprep.subr.bf16.mxu0 0
      %486 = vmatpush1.bf16.msra.mxu0 %v463
      %487 = vmatprep.subr.bf16.mxu0 0
      %488 = vmatpush1.bf16.msra.mxu0 %v464
      %489 = vmatprep.subr.bf16.mxu0 0
      %490 = vmatpush1.bf16.msra.mxu0 0
      %491 = vmatprep.subr.bf16.mxu0 0
      %492 = vmatpush1.bf16.msra.mxu0 0
      %493 = vmatprep.subr.bf16.mxu0 0
      %494 = vmatpush1.bf16.msra.mxu0 0
      %495 = vmatprep.subr.bf16.mxu0 0
      %496 = vmatpush1.bf16.msra.mxu0 0
      %497 = vmatprep.subr.bf16.mxu0 0
      %498 = vmatpush1.bf16.msra.mxu0 0
      %499 = vmatprep.subr.bf16.mxu0 0
      %500 = vmatpush1.bf16.msra.mxu0 0
      %501 = vmatprep.subr.bf16.mxu0 0
      %502 = vmatpush1.bf16.msra.mxu0 0
      %503 = vmatprep.subr.bf16.mxu0 0
      %504 = vmatpush1.bf16.msra.mxu0 0
      %505 = vmatprep.mubr.bf16.mxu0 0
      %506 = vmatmul.mubr.bf16.gmra.mrb[0].mxu0 %v407
      %v507 = vpop.f32.mrb[0].mxu0
      %v508 = vadd.f32 0.0, %v507
      %v509 = vpop.f32.mrb[0].mxu0
      %v510 = vpop.f32.mrb[0].mxu0
      %v511 = vadd.f32 0.0, %v510
      %v512 = vpop.f32.mrb[0].mxu0
      %513 = vmatprep.mubr.bf16.mxu0 0
      %514 = vmatmul.mubr.bf16.gmra.mrb[0].mxu0 %v408
      %v515 = vpop.f32.mrb[0].mxu0
      %v516 = vadd.f32 0.0, %v515
      %v517 = vpop.f32.mrb[0].mxu0
      %v518 = vpop.f32.mrb[0].mxu0
      %v519 = vadd.f32 0.0, %v518
      %v520 = vpop.f32.mrb[0].mxu0
      %521 = vdwg.mxu0
      %v522 = vadd.f32 %v376, %v508
      %v523 = vadd.f32 %v380, %v511
      %v524 = vadd.f32 %v386, %v516
      %v525 = vadd.f32 %v390, %v519
      %v526 = vld [vmem:[%s4] sm:$0x1]
      %v528 = vlaneseq
      %v529 = vshrl.u32 %v528, 7
      %v530 = vsub.s32 0, %v529
      %v531 = vrot.slane %v526, %v530
      %v533 = vadd.f32 %v522, %v531
      %v534 = vadd.f32 %v523, %v531
      %v535 = vadd.f32 %v524, %v531
      %v536 = vadd.f32 %v525, %v531
      %vm537 = vcmask 64512
      %538 = vst.msk [vmem:[%s226] sm:$0xff] %vm537, %v533
      %539 = vst.msk [vmem:[%s226 + $0x8] sm:$0xff] %vm537, %v534
      %540 = vst.msk [vmem:[%s226 + $0x10] sm:$0xff] %vm537, %v535
      %541 = vst.msk [vmem:[%s226 + $0x18] sm:$0xff] %vm537, %v536
      %s542 = smul.u32 4, %s16
      %p543 = scmp.lt.s32.totalorder %s542, 7
      %s544 = scalar_select %p543, %s542, 7
      %s545 = smul.addr %s544, 8
      %s546 = scalar_lea.vmem %s5, %s545
      // Predicated region
      $region41: #{tpu_custom_call.1} parent=39 // pred_check
        %p547 = pneg %p144
      $region42: #{tpu_custom_call.1} parent=39 // pred_check_branch
        %549 = sbr.rel (%p547) target = $region44
      $region43: #{tpu_custom_call.1} parent=39 // pred_region
        %s550 = smul.u32 4, %s16
      $region44: #{tpu_custom_call.1} parent=39 // pred_fallthru
        _
    $region40: #{tpu_custom_call.1} parent=5 // pred_fallthru
      _
    %p551 = scmp.le.s32.totalorder 2, %s11
    // Predicated region
    $region45: #{tpu_custom_call.1} parent=5 // pred_check
      %p552 = pneg %p551
    $region46: #{tpu_custom_call.1} parent=5 // pred_check_branch
      %554 = sbr.rel (%p552) target = $region48
    $region47: #{tpu_custom_call.1} parent=5 // pred_region
      %s555 = ssub.s32 %s11, 2
      // Predicated region
      $region49: #{tpu_custom_call.1} parent=47 // pred_check
        %p556 = pneg %p150
      $region50: #{tpu_custom_call.1} parent=47 // pred_check_branch
        %558 = sbr.rel (%p556) target = $region52
      $region51: #{tpu_custom_call.1} parent=47 // pred_region
        %s559 = smul.u32 4, %s17
        %p560 = scmp.lt.s32.totalorder %s559, 7
        %s561 = scalar_select %p560, %s559, 7
        %s562 = smul.addr %s561, 8
        %s563 = scalar_lea.vmem %s5, %s562
      $region52: #{tpu_custom_call.1} parent=47 // pred_fallthru
        _
    $region48: #{tpu_custom_call.1} parent=5 // pred_fallthru
      _
  $region6: #{tpu_custom_call.1} parent=0 // loop_footer
    %s15 = sadd.s32 1, %s11
  $region7: #{tpu_custom_call.1} parent=0 // loop_footer_branch
    %10 = sbr.rel target = $region3
  $region8: #{tpu_custom_call.1} parent=0 // loop_exit
    _

</llo_original>
